<compile_context>
chip_gen: v7x
topology: tpu7x:2x2x1
jax: 0.10.0
libtpu: 0.0.40
codegen_flags: <defaults>
</compile_context>

<pallas_src>
import functools

import numpy as np
import jax
import jax.numpy as jnp
from jax.experimental import pallas as pl
from jax.experimental.pallas import tpu as pltpu


def _edge_length_loss_kernel(v0o_ref, v1o_ref, v2o_ref,
                             v0g_ref, v1g_ref, v2g_ref,
                             out_ref, acc_ref, *, b, inv_count):
    @pl.when(pl.program_id(0) == 0)
    def _init():
        acc_ref[0, 0] = jnp.float32(0.0)

    def comps(ref):
        # rows 0:b = x, b:2b = y, 2b:3b = z (static sublane slices)
        return ref[0:b, :], ref[b:2 * b, :], ref[2 * b:3 * b, :]

    def edge(p, q):
        dx, dy, dz = p[0] - q[0], p[1] - q[1], p[2] - q[2]
        return jnp.sqrt(dx * dx + dy * dy + dz * dz)          # (B, TF)

    v0o, v1o, v2o = comps(v0o_ref), comps(v1o_ref), comps(v2o_ref)
    v0g, v1g, v2g = comps(v0g_ref), comps(v1g_ref), comps(v2g_ref)

    # Fused |d_out - d_gt| over the three edges -> single reduction per tile.
    diff = (jnp.abs(edge(v0o, v1o) - edge(v0g, v1g))
            + jnp.abs(edge(v0o, v2o) - edge(v0g, v2g))
            + jnp.abs(edge(v1o, v2o) - edge(v1g, v2g)))
    acc_ref[0, 0] += jnp.sum(diff)

    @pl.when(pl.program_id(0) == pl.num_programs(0) - 1)
    def _finalize():
        out_ref[0, 0] = acc_ref[0, 0] * inv_count


@functools.partial(jax.jit, static_argnames=("tile_f",))
def edge_length_loss(coord_out, coord_gt, face, *, tile_f=None):
    """coord_out, coord_gt: (B, V, 3); face: (F, 3) int. Returns scalar f32."""
    coord_out = jnp.asarray(coord_out, jnp.float32)
    coord_gt = jnp.asarray(coord_gt, jnp.float32)
    face = jnp.asarray(face, jnp.int32)

    B, V, _ = coord_out.shape
    F = face.shape[0]
    rows = 3 * B

    # One small (V-sized) transpose per coord array: (B, V, 3) -> (3, B, V)
    # -> (3B, V); gathers then produce the lane-major (3B, F) layout directly.
    co_t = jnp.transpose(coord_out, (2, 0, 1)).reshape(rows, V)
    cg_t = jnp.transpose(coord_gt, (2, 0, 1)).reshape(rows, V)

    def gather(c_t, col):
        return jnp.take(c_t, face[:, col], axis=1)            # (3B, F)

    verts = [gather(co_t, 0), gather(co_t, 1), gather(co_t, 2),
             gather(cg_t, 0), gather(cg_t, 1), gather(cg_t, 2)]

    # Tile the face axis: 6 double-buffered f32 inputs of (3B, TF) kept well
    # under the smallest scoped-VMEM default (16 MiB on v5e) -> ~8 MiB budget.
    if tile_f is None:
        budget = 8 * 1024 * 1024
        per_lane_bytes = 6 * 2 * rows * 4
        tile_f = max(128, min(2048, (budget // per_lane_bytes) // 128 * 128))
    else:
        tile_f = max(128, (tile_f // 128) * 128)

    if F <= tile_f:
        tf, f_pad = F, F                       # single block, no padding
    else:
        tf = tile_f
        f_pad = pl.cdiv(F, tf) * tf
        pad = f_pad - F
        if pad:
            # Zero padding => d_out == d_gt == 0 on padded lanes => 0 contribution.
            verts = [jnp.pad(v, ((0, 0), (0, pad))) for v in verts]

    grid = (f_pad // tf,)
    in_spec = pl.BlockSpec((rows, tf), lambda i: (0, i))

    kernel = functools.partial(_edge_length_loss_kernel, b=B,
                               inv_count=1.0 / (B * 3 * F))

    out = pl.pallas_call(
        kernel,
        out_shape=jax.ShapeDtypeStruct((1, 1), jnp.float32),
        grid_spec=pltpu.PrefetchScalarGridSpec(
            num_scalar_prefetch=0,
            grid=grid,
            in_specs=[in_spec] * 6,
            out_specs=pl.BlockSpec(memory_space=pltpu.SMEM),
            scratch_shapes=[pltpu.SMEM((1, 1), jnp.float32)]),
        compiler_params=pltpu.CompilerParams(
            dimension_semantics=("arbitrary",)),
    )(*verts)
    return out[0, 0]


def _reference(coord_out, coord_gt, face):
    co = np.asarray(coord_out, dtype=np.float32)
    cg = np.asarray(coord_gt, dtype=np.float32)
    f = np.asarray(face, dtype=np.int64)

    def edges(c):
        d1 = np.sqrt(np.sum((c[:, f[:, 0], :] - c[:, f[:, 1], :]) ** 2, 2, keepdims=True))
        d2 = np.sqrt(np.sum((c[:, f[:, 0], :] - c[:, f[:, 2], :]) ** 2, 2, keepdims=True))
        d3 = np.sqrt(np.sum((c[:, f[:, 1], :] - c[:, f[:, 2], :]) ** 2, 2, keepdims=True))
        return d1, d2, d3

    d1o, d2o, d3o = edges(co)
    d1g, d2g, d3g = edges(cg)
    loss = np.concatenate((np.abs(d1o - d1g), np.abs(d2o - d2g), np.abs(d3o - d3g)), axis=1)
    return loss.mean()


if __name__ == "__main__":
    key = jax.random.PRNGKey(0)
    k1, k2, k3, k4, k5, k6 = jax.random.split(key, 6)

    # Case 1: small shapes, single block (F <= tile).
    B, V, F = 2, 16, 8
    coord_out = jax.random.normal(k1, (B, V, 3), dtype=jnp.float32)
    coord_gt = jax.random.normal(k2, (B, V, 3), dtype=jnp.float32)
    face = jax.random.randint(k3, (F, 3), minval=0, maxval=V, dtype=jnp.int32)

    loss = jax.block_until_ready(edge_length_loss(coord_out, coord_gt, face))
    ref = _reference(coord_out, coord_gt, face)
    np.testing.assert_allclose(np.asarray(loss), ref, rtol=1e-5, atol=1e-5)

    # Case 2: F not a multiple of the tile -> exercises grid + zero-pad path.
    B2, V2, F2 = 2, 16, 300
    co2 = jax.random.normal(k4, (B2, V2, 3), dtype=jnp.float32)
    cg2 = jax.random.normal(k5, (B2, V2, 3), dtype=jnp.float32)
    face2 = jax.random.randint(k6, (F2, 3), minval=0, maxval=V2, dtype=jnp.int32)

    loss2 = jax.block_until_ready(edge_length_loss(co2, cg2, face2, tile_f=128))
    ref2 = _reference(co2, cg2, face2)
    np.testing.assert_allclose(np.asarray(loss2), ref2, rtol=1e-5, atol=1e-5)

    print("KERNEL_OK")
</pallas_src>

<mosaic_0001>
module attributes {stable_mosaic.version = 11 : i64} {
  func.func @_edge_length_loss_kernel(%arg0: i32, %arg1: memref<6x8xf32, #tpu.memory_space<vmem>>, %arg2: memref<6x8xf32, #tpu.memory_space<vmem>>, %arg3: memref<6x8xf32, #tpu.memory_space<vmem>>, %arg4: memref<6x8xf32, #tpu.memory_space<vmem>>, %arg5: memref<6x8xf32, #tpu.memory_space<vmem>>, %arg6: memref<6x8xf32, #tpu.memory_space<vmem>>, %arg7: memref<1x1xf32, #tpu.memory_space<smem>>, %arg8: memref<1x1xf32, #tpu.memory_space<smem>>) attributes {dimension_semantics = [#tpu.dimension_semantics<arbitrary>], iteration_bounds = array<i64: 1>, scalar_prefetch = 0 : i64, scratch_operands = 1 : i64, tpu.core_type = #tpu.core_type<tc>, window_params = [{transform_indices = @transform_0, window_bounds = array<i64: 6, 8>}, {transform_indices = @transform_1, window_bounds = array<i64: 6, 8>}, {transform_indices = @transform_2, window_bounds = array<i64: 6, 8>}, {transform_indices = @transform_3, window_bounds = array<i64: 6, 8>}, {transform_indices = @transform_4, window_bounds = array<i64: 6, 8>}, {transform_indices = @transform_5, window_bounds = array<i64: 6, 8>}, {transform_indices = @transform_6, window_bounds = array<i64: 1, 1>}]} {
    %c0_i32 = arith.constant 0 : i32
    %0 = arith.cmpi eq, %arg0, %c0_i32 : i32
    %1 = arith.extui %0 : i1 to i32
    %c0_i32_0 = arith.constant 0 : i32
    %2 = arith.cmpi ne, %1, %c0_i32_0 : i32
    scf.if %2 {
      %cst_40 = arith.constant 0.000000e+00 : f32
      %c0_41 = arith.constant 0 : index
      %c0_42 = arith.constant 0 : index
      %93 = memref.load %arg8[%c0_41, %c0_42] : memref<1x1xf32, #tpu.memory_space<smem>>
      memref.store %cst_40, %arg8[%c0_41, %c0_42] : memref<1x1xf32, #tpu.memory_space<smem>>
    } else {
    }
    %c0 = arith.constant 0 : index
    %c0_1 = arith.constant 0 : index
    %3 = vector.load %arg1[%c0, %c0_1] : memref<6x8xf32, #tpu.memory_space<vmem>>, vector<2x8xf32>
    %c2 = arith.constant 2 : index
    %c0_2 = arith.constant 0 : index
    %4 = vector.load %arg1[%c2, %c0_2] : memref<6x8xf32, #tpu.memory_space<vmem>>, vector<2x8xf32>
    %c4 = arith.constant 4 : index
    %c0_3 = arith.constant 0 : index
    %5 = vector.load %arg1[%c4, %c0_3] : memref<6x8xf32, #tpu.memory_space<vmem>>, vector<2x8xf32>
    %c0_4 = arith.constant 0 : index
    %c0_5 = arith.constant 0 : index
    %6 = vector.load %arg2[%c0_4, %c0_5] : memref<6x8xf32, #tpu.memory_space<vmem>>, vector<2x8xf32>
    %c2_6 = arith.constant 2 : index
    %c0_7 = arith.constant 0 : index
    %7 = vector.load %arg2[%c2_6, %c0_7] : memref<6x8xf32, #tpu.memory_space<vmem>>, vector<2x8xf32>
    %c4_8 = arith.constant 4 : index
    %c0_9 = arith.constant 0 : index
    %8 = vector.load %arg2[%c4_8, %c0_9] : memref<6x8xf32, #tpu.memory_space<vmem>>, vector<2x8xf32>
    %c0_10 = arith.constant 0 : index
    %c0_11 = arith.constant 0 : index
    %9 = vector.load %arg3[%c0_10, %c0_11] : memref<6x8xf32, #tpu.memory_space<vmem>>, vector<2x8xf32>
    %c2_12 = arith.constant 2 : index
    %c0_13 = arith.constant 0 : index
    %10 = vector.load %arg3[%c2_12, %c0_13] : memref<6x8xf32, #tpu.memory_space<vmem>>, vector<2x8xf32>
    %c4_14 = arith.constant 4 : index
    %c0_15 = arith.constant 0 : index
    %11 = vector.load %arg3[%c4_14, %c0_15] : memref<6x8xf32, #tpu.memory_space<vmem>>, vector<2x8xf32>
    %c0_16 = arith.constant 0 : index
    %c0_17 = arith.constant 0 : index
    %12 = vector.load %arg4[%c0_16, %c0_17] : memref<6x8xf32, #tpu.memory_space<vmem>>, vector<2x8xf32>
    %c2_18 = arith.constant 2 : index
    %c0_19 = arith.constant 0 : index
    %13 = vector.load %arg4[%c2_18, %c0_19] : memref<6x8xf32, #tpu.memory_space<vmem>>, vector<2x8xf32>
    %c4_20 = arith.constant 4 : index
    %c0_21 = arith.constant 0 : index
    %14 = vector.load %arg4[%c4_20, %c0_21] : memref<6x8xf32, #tpu.memory_space<vmem>>, vector<2x8xf32>
    %c0_22 = arith.constant 0 : index
    %c0_23 = arith.constant 0 : index
    %15 = vector.load %arg5[%c0_22, %c0_23] : memref<6x8xf32, #tpu.memory_space<vmem>>, vector<2x8xf32>
    %c2_24 = arith.constant 2 : index
    %c0_25 = arith.constant 0 : index
    %16 = vector.load %arg5[%c2_24, %c0_25] : memref<6x8xf32, #tpu.memory_space<vmem>>, vector<2x8xf32>
    %c4_26 = arith.constant 4 : index
    %c0_27 = arith.constant 0 : index
    %17 = vector.load %arg5[%c4_26, %c0_27] : memref<6x8xf32, #tpu.memory_space<vmem>>, vector<2x8xf32>
    %c0_28 = arith.constant 0 : index
    %c0_29 = arith.constant 0 : index
    %18 = vector.load %arg6[%c0_28, %c0_29] : memref<6x8xf32, #tpu.memory_space<vmem>>, vector<2x8xf32>
    %c2_30 = arith.constant 2 : index
    %c0_31 = arith.constant 0 : index
    %19 = vector.load %arg6[%c2_30, %c0_31] : memref<6x8xf32, #tpu.memory_space<vmem>>, vector<2x8xf32>
    %c4_32 = arith.constant 4 : index
    %c0_33 = arith.constant 0 : index
    %20 = vector.load %arg6[%c4_32, %c0_33] : memref<6x8xf32, #tpu.memory_space<vmem>>, vector<2x8xf32>
    %21 = arith.subf %3, %6 : vector<2x8xf32>
    %22 = arith.subf %4, %7 : vector<2x8xf32>
    %23 = arith.subf %5, %8 : vector<2x8xf32>
    %24 = arith.mulf %21, %21 : vector<2x8xf32>
    %25 = arith.mulf %22, %22 : vector<2x8xf32>
    %26 = arith.addf %24, %25 : vector<2x8xf32>
    %27 = arith.mulf %23, %23 : vector<2x8xf32>
    %28 = arith.addf %26, %27 : vector<2x8xf32>
    %29 = math.sqrt %28 : vector<2x8xf32>
    %30 = arith.subf %12, %15 : vector<2x8xf32>
    %31 = arith.subf %13, %16 : vector<2x8xf32>
    %32 = arith.subf %14, %17 : vector<2x8xf32>
    %33 = arith.mulf %30, %30 : vector<2x8xf32>
    %34 = arith.mulf %31, %31 : vector<2x8xf32>
    %35 = arith.addf %33, %34 : vector<2x8xf32>
    %36 = arith.mulf %32, %32 : vector<2x8xf32>
    %37 = arith.addf %35, %36 : vector<2x8xf32>
    %38 = math.sqrt %37 : vector<2x8xf32>
    %39 = arith.subf %29, %38 : vector<2x8xf32>
    %40 = math.absf %39 : vector<2x8xf32>
    %41 = arith.subf %3, %9 : vector<2x8xf32>
    %42 = arith.subf %4, %10 : vector<2x8xf32>
    %43 = arith.subf %5, %11 : vector<2x8xf32>
    %44 = arith.mulf %41, %41 : vector<2x8xf32>
    %45 = arith.mulf %42, %42 : vector<2x8xf32>
    %46 = arith.addf %44, %45 : vector<2x8xf32>
    %47 = arith.mulf %43, %43 : vector<2x8xf32>
    %48 = arith.addf %46, %47 : vector<2x8xf32>
    %49 = math.sqrt %48 : vector<2x8xf32>
    %50 = arith.subf %12, %18 : vector<2x8xf32>
    %51 = arith.subf %13, %19 : vector<2x8xf32>
    %52 = arith.subf %14, %20 : vector<2x8xf32>
    %53 = arith.mulf %50, %50 : vector<2x8xf32>
    %54 = arith.mulf %51, %51 : vector<2x8xf32>
    %55 = arith.addf %53, %54 : vector<2x8xf32>
    %56 = arith.mulf %52, %52 : vector<2x8xf32>
    %57 = arith.addf %55, %56 : vector<2x8xf32>
    %58 = math.sqrt %57 : vector<2x8xf32>
    %59 = arith.subf %49, %58 : vector<2x8xf32>
    %60 = math.absf %59 : vector<2x8xf32>
    %61 = arith.addf %40, %60 : vector<2x8xf32>
    %62 = arith.subf %6, %9 : vector<2x8xf32>
    %63 = arith.subf %7, %10 : vector<2x8xf32>
    %64 = arith.subf %8, %11 : vector<2x8xf32>
    %65 = arith.mulf %62, %62 : vector<2x8xf32>
    %66 = arith.mulf %63, %63 : vector<2x8xf32>
    %67 = arith.addf %65, %66 : vector<2x8xf32>
    %68 = arith.mulf %64, %64 : vector<2x8xf32>
    %69 = arith.addf %67, %68 : vector<2x8xf32>
    %70 = math.sqrt %69 : vector<2x8xf32>
    %71 = arith.subf %15, %18 : vector<2x8xf32>
    %72 = arith.subf %16, %19 : vector<2x8xf32>
    %73 = arith.subf %17, %20 : vector<2x8xf32>
    %74 = arith.mulf %71, %71 : vector<2x8xf32>
    %75 = arith.mulf %72, %72 : vector<2x8xf32>
    %76 = arith.addf %74, %75 : vector<2x8xf32>
    %77 = arith.mulf %73, %73 : vector<2x8xf32>
    %78 = arith.addf %76, %77 : vector<2x8xf32>
    %79 = math.sqrt %78 : vector<2x8xf32>
    %80 = arith.subf %70, %79 : vector<2x8xf32>
    %81 = math.absf %80 : vector<2x8xf32>
    %82 = arith.addf %61, %81 : vector<2x8xf32>
    %c0_34 = arith.constant 0 : index
    %c0_35 = arith.constant 0 : index
    %83 = memref.load %arg8[%c0_34, %c0_35] : memref<1x1xf32, #tpu.memory_space<smem>>
    %84 = vector.shape_cast %82 : vector<2x8xf32> to vector<1x2x8xf32>
    %cst = arith.constant dense<0.000000e+00> : vector<1xf32>
    %85 = vector.multi_reduction <add>, %84, %cst [1, 2] : vector<1x2x8xf32> to vector<1xf32>
    %86 = vector.shape_cast %85 : vector<1xf32> to vector<1x1x1xf32>
    %87 = vector.extract %86[0, 0, 0] : f32 from vector<1x1x1xf32>
    %88 = arith.addf %83, %87 : f32
    %c0_36 = arith.constant 0 : index
    %c0_37 = arith.constant 0 : index
    %89 = memref.load %arg8[%c0_36, %c0_37] : memref<1x1xf32, #tpu.memory_space<smem>>
    memref.store %88, %arg8[%c0_36, %c0_37] : memref<1x1xf32, #tpu.memory_space<smem>>
    %c0_i32_38 = arith.constant 0 : i32
    %90 = arith.cmpi eq, %arg0, %c0_i32_38 : i32
    %91 = arith.extui %90 : i1 to i32
    %c0_i32_39 = arith.constant 0 : i32
    %92 = arith.cmpi ne, %91, %c0_i32_39 : i32
    scf.if %92 {
      %c0_40 = arith.constant 0 : index
      %c0_41 = arith.constant 0 : index
      %93 = memref.load %arg8[%c0_40, %c0_41] : memref<1x1xf32, #tpu.memory_space<smem>>
      %cst_42 = arith.constant 0.020833334 : f32
      %94 = arith.mulf %93, %cst_42 : f32
      %c0_43 = arith.constant 0 : index
      %c0_44 = arith.constant 0 : index
      %95 = memref.load %arg7[%c0_43, %c0_44] : memref<1x1xf32, #tpu.memory_space<smem>>
      memref.store %94, %arg7[%c0_43, %c0_44] : memref<1x1xf32, #tpu.memory_space<smem>>
    } else {
    }
    return
  }
  func.func @transform_0(%arg0: i32) -> (i32, i32) {
    %c0_i32 = arith.constant 0 : i32
    %c0_i32_0 = arith.constant 0 : i32
    return %c0_i32, %arg0 : i32, i32
  }
  func.func @transform_1(%arg0: i32) -> (i32, i32) {
    %c0_i32 = arith.constant 0 : i32
    %c0_i32_0 = arith.constant 0 : i32
    return %c0_i32, %arg0 : i32, i32
  }
  func.func @transform_2(%arg0: i32) -> (i32, i32) {
    %c0_i32 = arith.constant 0 : i32
    %c0_i32_0 = arith.constant 0 : i32
    return %c0_i32, %arg0 : i32, i32
  }
  func.func @transform_3(%arg0: i32) -> (i32, i32) {
    %c0_i32 = arith.constant 0 : i32
    %c0_i32_0 = arith.constant 0 : i32
    return %c0_i32, %arg0 : i32, i32
  }
  func.func @transform_4(%arg0: i32) -> (i32, i32) {
    %c0_i32 = arith.constant 0 : i32
    %c0_i32_0 = arith.constant 0 : i32
    return %c0_i32, %arg0 : i32, i32
  }
  func.func @transform_5(%arg0: i32) -> (i32, i32) {
    %c0_i32 = arith.constant 0 : i32
    %c0_i32_0 = arith.constant 0 : i32
    return %c0_i32, %arg0 : i32, i32
  }
  func.func @transform_6(%arg0: i32) -> (i32, i32) {
    %c0_i32 = arith.constant 0 : i32
    %c0_i32_0 = arith.constant 0 : i32
    %c0_i32_1 = arith.constant 0 : i32
    return %c0_i32, %c0_i32_0 : i32, i32
  }
}

</mosaic_0001>

<llo_original>
// kernel: edge_length_loss.1
$region0: #{edge_length_loss.1}
  #allocation0 [shape = 'u32[]', space=smem, size = 0x4, offset = 0x4, fixed_abs, tag = 'smem constant byte address 0x4 - core index']
  #allocation1 [shape = 'u32[144,128]{1,0:T(1,128)}', space=vmem, size = 0x12000, scoped, tag = 'internal scratch']
  #allocation2 [shape = 'f32[1,1]{1,0:T(1,128)}', space=smem, size = 0x200, scoped, tag = 'scratch operand']
  %s0 = inlined_call_operand.vmem [shape: f32[6,8], index: 0, kind: input, shape index: {}]
  %s1 = inlined_call_operand.vmem [shape: f32[6,8], index: 1, kind: input, shape index: {}]
  %s2 = inlined_call_operand.vmem [shape: f32[6,8], index: 2, kind: input, shape index: {}]
  %s3 = inlined_call_operand.vmem [shape: f32[6,8], index: 3, kind: input, shape index: {}]
  %s4 = inlined_call_operand.vmem [shape: f32[6,8], index: 4, kind: input, shape index: {}]
  %s5 = inlined_call_operand.vmem [shape: f32[6,8], index: 5, kind: input, shape index: {}]
  %s6 = inlined_call_operand.hbm [shape: f32[1,1], index: 6, kind: output, shape index: {}]
  %s7 = sld [smem:[#allocation0]]
  $region42: #{edge_length_loss.1} parent=0
    _
  %s9 = ssub.s32 1, %s7
  %s10 = scalar_select 0, %s9, %s7
  $region1: #{edge_length_loss.1} parent=0
    #allocation3 [shape = 'u8[512]{0}', space=smem, size = 0x200, scoped, tag = 'output window, operand 0, single buffered']
    #allocation4 [shape = 's32[1]{0}', space=sflag, size = 0x4, scoped, tag = 'scoped memory for edge_length_loss.1']
    %11 = vsyncpa [#allocation4], 0
    // Predicated region
    $region2: #{edge_length_loss.1} parent=1 // pred_check
      _
    $region3: #{edge_length_loss.1} parent=1 // pred_check_branch
      %13 = sbr.rel (0) target = $region5
    $region4: #{edge_length_loss.1} parent=1 // pred_region
      _
    $region5: #{edge_length_loss.1} parent=1 // pred_fallthru
      _
    // Predicated region
    $region6: #{edge_length_loss.1} parent=1 // pred_check
      _
    $region7: #{edge_length_loss.1} parent=1 // pred_check_branch
      %15 = sbr.rel (0) target = $region9
    $region8: #{edge_length_loss.1} parent=1 // pred_region
      _
    $region9: #{edge_length_loss.1} parent=1 // pred_fallthru
      _
    // Predicated region
    $region10: #{edge_length_loss.1} parent=1 // pred_check
      _
    $region11: #{edge_length_loss.1} parent=1 // pred_check_branch
      %17 = sbr.rel (0) target = $region13
    $region12: #{edge_length_loss.1} parent=1 // pred_region
      _
    $region13: #{edge_length_loss.1} parent=1 // pred_fallthru
      _
    // Predicated region
    $region14: #{edge_length_loss.1} parent=1 // pred_check
      _
    $region15: #{edge_length_loss.1} parent=1 // pred_check_branch
      %19 = sbr.rel (0) target = $region17
    $region16: #{edge_length_loss.1} parent=1 // pred_region
      _
    $region17: #{edge_length_loss.1} parent=1 // pred_fallthru
      _
    // Predicated region
    $region18: #{edge_length_loss.1} parent=1 // pred_check
      _
    $region19: #{edge_length_loss.1} parent=1 // pred_check_branch
      %21 = sbr.rel (0) target = $region21
    $region20: #{edge_length_loss.1} parent=1 // pred_region
      _
    $region21: #{edge_length_loss.1} parent=1 // pred_fallthru
      _
    // Predicated region
    $region22: #{edge_length_loss.1} parent=1 // pred_check
      _
    $region23: #{edge_length_loss.1} parent=1 // pred_check_branch
      %23 = sbr.rel (0) target = $region25
    $region24: #{edge_length_loss.1} parent=1 // pred_region
      _
    $region25: #{edge_length_loss.1} parent=1 // pred_fallthru
      _
    %p24 = scmp.eq.s32.totalorder 0, 0
    // Predicated region
    $region26: #{edge_length_loss.1} parent=1 // pred_check
      %p25 = pneg %p24
    $region27: #{edge_length_loss.1} parent=1 // pred_check_branch
      %27 = sbr.rel (%p25) target = $region29
    $region28: #{edge_length_loss.1} parent=1 // pred_region
      %s28 = scalar_lea.smem [#allocation2], 0
      %29 = sst [smem:[%s28]] 0.0
    $region29: #{edge_length_loss.1} parent=1 // pred_fallthru
      _
    %v30 = vld [vmem:[%s0] sm:$0x3]
    %v31 = vld [vmem:[%s0 + $0x2] sm:$0x3]
    %v32 = vld [vmem:[%s0 + $0x4] sm:$0x3]
    %v33 = vld [vmem:[%s1] sm:$0x3]
    %v34 = vld [vmem:[%s1 + $0x2] sm:$0x3]
    %v35 = vld [vmem:[%s1 + $0x4] sm:$0x3]
    %v36 = vld [vmem:[%s2] sm:$0x3]
    %v37 = vld [vmem:[%s2 + $0x2] sm:$0x3]
    %v38 = vld [vmem:[%s2 + $0x4] sm:$0x3]
    %v39 = vld [vmem:[%s3] sm:$0x3]
    %v40 = vld [vmem:[%s3 + $0x2] sm:$0x3]
    %v41 = vld [vmem:[%s3 + $0x4] sm:$0x3]
    %v42 = vld [vmem:[%s4] sm:$0x3]
    %v43 = vld [vmem:[%s4 + $0x2] sm:$0x3]
    %v44 = vld [vmem:[%s4 + $0x4] sm:$0x3]
    %v45 = vld [vmem:[%s5] sm:$0x3]
    %v46 = vld [vmem:[%s5 + $0x2] sm:$0x3]
    %v47 = vld [vmem:[%s5 + $0x4] sm:$0x3]
    %v48 = vsub.f32 %v30, %v33
    %v49 = vsub.f32 %v31, %v34
    %v50 = vsub.f32 %v32, %v35
    %v51 = vmul.f32 %v48, %v48
    %v52 = vmul.f32 %v49, %v49
    %v53 = vadd.f32 %v51, %v52
    %v54 = vmul.f32 %v50, %v50
    %v55 = vadd.f32 %v53, %v54
    %v56 = vrsqrt.pop %v55
    %v57 = vmul.f32 %v55, %v56
    %vm58 = vcmp.eq.f32.partialorder %v55, inf
    %v59 = vsel %vm58, %v55, %v57
    %vm60 = vcmp.eq.f32.partialorder %v55, 0.0
    %v61 = vand.u32 %v55, 2147483648
    %v62 = vsel %vm60, %v61, %v59
    %v63 = vsub.f32 %v39, %v42
    %v64 = vsub.f32 %v40, %v43
    %v65 = vsub.f32 %v41, %v44
    %v66 = vmul.f32 %v63, %v63
    %v67 = vmul.f32 %v64, %v64
    %v68 = vadd.f32 %v66, %v67
    %v69 = vmul.f32 %v65, %v65
    %v70 = vadd.f32 %v68, %v69
    %v71 = vrsqrt.pop %v70
    %v72 = vmul.f32 %v70, %v71
    %vm73 = vcmp.eq.f32.partialorder %v70, inf
    %v74 = vsel %vm73, %v70, %v72
    %vm75 = vcmp.eq.f32.partialorder %v70, 0.0
    %v76 = vand.u32 %v70, 2147483648
    %v77 = vsel %vm75, %v76, %v74
    %v78 = vsub.f32 %v62, %v77
    %v79 = vand.u32 2147483647, %v78
    %v80 = vsub.f32 %v30, %v36
    %v81 = vsub.f32 %v31, %v37
    %v82 = vsub.f32 %v32, %v38
    %v83 = vmul.f32 %v80, %v80
    %v84 = vmul.f32 %v81, %v81
    %v85 = vadd.f32 %v83, %v84
    %v86 = vmul.f32 %v82, %v82
    %v87 = vadd.f32 %v85, %v86
    %v88 = vrsqrt.pop %v87
    %v89 = vmul.f32 %v87, %v88
    %vm90 = vcmp.eq.f32.partialorder %v87, inf
    %v91 = vsel %vm90, %v87, %v89
    %vm92 = vcmp.eq.f32.partialorder %v87, 0.0
    %v93 = vand.u32 %v87, 2147483648
    %v94 = vsel %vm92, %v93, %v91
    %v95 = vsub.f32 %v39, %v45
    %v96 = vsub.f32 %v40, %v46
    %v97 = vsub.f32 %v41, %v47
    %v98 = vmul.f32 %v95, %v95
    %v99 = vmul.f32 %v96, %v96
    %v100 = vadd.f32 %v98, %v99
    %v101 = vmul.f32 %v97, %v97
    %v102 = vadd.f32 %v100, %v101
    %v103 = vrsqrt.pop %v102
    %v104 = vmul.f32 %v102, %v103
    %vm105 = vcmp.eq.f32.partialorder %v102, inf
    %v106 = vsel %vm105, %v102, %v104
    %vm107 = vcmp.eq.f32.partialorder %v102, 0.0
    %v108 = vand.u32 %v102, 2147483648
    %v109 = vsel %vm107, %v108, %v106
    %v110 = vsub.f32 %v94, %v109
    %v111 = vand.u32 2147483647, %v110
    %v112 = vadd.f32 %v79, %v111
    %v113 = vsub.f32 %v33, %v36
    %v114 = vsub.f32 %v34, %v37
    %v115 = vsub.f32 %v35, %v38
    %v116 = vmul.f32 %v113, %v113
    %v117 = vmul.f32 %v114, %v114
    %v118 = vadd.f32 %v116, %v117
    %v119 = vmul.f32 %v115, %v115
    %v120 = vadd.f32 %v118, %v119
    %v121 = vrsqrt.pop %v120
    %v122 = vmul.f32 %v120, %v121
    %vm123 = vcmp.eq.f32.partialorder %v120, inf
    %v124 = vsel %vm123, %v120, %v122
    %vm125 = vcmp.eq.f32.partialorder %v120, 0.0
    %v126 = vand.u32 %v120, 2147483648
    %v127 = vsel %vm125, %v126, %v124
    %v128 = vsub.f32 %v42, %v45
    %v129 = vsub.f32 %v43, %v46
    %v130 = vsub.f32 %v44, %v47
    %v131 = vmul.f32 %v128, %v128
    %v132 = vmul.f32 %v129, %v129
    %v133 = vadd.f32 %v131, %v132
    %v134 = vmul.f32 %v130, %v130
    %v135 = vadd.f32 %v133, %v134
    %v136 = vrsqrt.pop %v135
    %v137 = vmul.f32 %v135, %v136
    %vm138 = vcmp.eq.f32.partialorder %v135, inf
    %v139 = vsel %vm138, %v135, %v137
    %vm140 = vcmp.eq.f32.partialorder %v135, 0.0
    %v141 = vand.u32 %v135, 2147483648
    %v142 = vsel %vm140, %v141, %v139
    %v143 = vsub.f32 %v127, %v142
    %v144 = vand.u32 2147483647, %v143
    %v145 = vadd.f32 %v112, %v144
    %s146 = sld [smem:[#allocation2]]
    %vm147 = vcmask 58368
    %v148 = vsel %vm147, %v145, 0.0
    %149 = vadd.xlane.f32.xlu0 %v148
    %v150 = vpop.xlane.xlu0 %149
    %v151 = vrot.slane %v150, 4
    %v152 = vadd.f32 %v150, %v151
    %v153 = vrot.slane %v152, 2
    %v154 = vadd.f32 %v152, %v153
    %v155 = vrot.slane %v154, 1
    %v156 = vadd.f32 %v154, %v155
    %s157 = vtos %v156
    %s158 = sadd.f32 %s146, %s157
    %s159 = scalar_lea.smem [#allocation2], 0
    %160 = sst [smem:[%s159]] %s158
    // Predicated region
    $region30: #{edge_length_loss.1} parent=1 // pred_check
      %p161 = pneg %p24
    $region31: #{edge_length_loss.1} parent=1 // pred_check_branch
      %163 = sbr.rel (%p161) target = $region33
    $region32: #{edge_length_loss.1} parent=1 // pred_region
      %s164 = sld [smem:[#allocation2]]
      %s165 = smul.f32 %s164, 0.020833334
      %s166 = scalar_lea.smem [#allocation3], 0
      %167 = sst [smem:[%s166]] %s165
    $region33: #{edge_length_loss.1} parent=1 // pred_fallthru
      _
    // Predicated region
    $region34: #{edge_length_loss.1} parent=1 // pred_check
      _
    $region35: #{edge_length_loss.1} parent=1 // pred_check_branch
      %169 = sbr.rel (0) target = $region37
    $region36: #{edge_length_loss.1} parent=1 // pred_region
      %s171 = ssub.s32 16, 16
      %172 = vsyncadd [#allocation4], %s171
      %175 = dma.smem_to_hbm [#allocation3], 16, %s6, [#allocation4]
    $region37: #{edge_length_loss.1} parent=1 // pred_fallthru
      _
    // Predicated region
    $region38: #{edge_length_loss.1} parent=1 // pred_check
      _
    $region39: #{edge_length_loss.1} parent=1 // pred_check_branch
      %177 = sbr.rel (0) target = $region41
    $region40: #{edge_length_loss.1} parent=1 // pred_region
      %178 = dma.done [#allocation4], 16
    $region41: #{edge_length_loss.1} parent=1 // pred_fallthru
      _
    %179 = sfence
    %180 = vsyncpa [#allocation4], 1

</llo_original>
